<compile_context>
chip_gen: v5e
topology: v5e:2x2
jax: 0.10.0
libtpu: 0.0.40
codegen_flags: <defaults>
</compile_context>

<pallas_src>
import functools

import jax
import jax.numpy as jnp
from jax.experimental import pallas as pl
from jax.experimental.pallas import tpu as pltpu


def _clip_loss_kernel(temp_ref, img_ref, txt_ref,
                      peri_ref, col_ref,
                      img_cache_ref, l_row_ref, m_row_ref, diag_ref,
                      *, fixed_shift):
    i = pl.program_id(0)            # image (row) tile index  -- megacore-parallel
    j = pl.program_id(1)            # text  (column) tile index -- sequential sweep
    n_j = pl.num_programs(1)

    inv_t = 1.0 / temp_ref[0]                     # runtime scalar from SMEM
    eps2 = jnp.float32(1e-12 * 1e-12)             # F.normalize eps, squared
    dot_dtype = img_cache_ref.dtype

    # ---- once per row-tile sweep: normalize + temp-scale the image operand ----
    @pl.when(j == 0)
    def _start_row_sweep():
        img_f = img_ref[...].astype(jnp.float32)                      # (bb, D)
        ss = jnp.sum(img_f * img_f, axis=-1, keepdims=True)           # (bb, 1)
        # 1/max(||x||, eps) == rsqrt(max(||x||^2, eps^2)); fold 1/T here.
        scale = jax.lax.rsqrt(jnp.maximum(ss, eps2)) * inv_t
        img_cache_ref[...] = (img_f * scale).astype(dot_dtype)
        l_row_ref[...] = jnp.zeros_like(l_row_ref)
        diag_ref[...] = jnp.zeros_like(diag_ref)
        if not fixed_shift:
            m_row_ref[...] = jnp.full_like(m_row_ref, -jnp.inf)

    # ---- per-step: normalize the text tile (f32 stats, operand in dot dtype) ----
    txt_f = txt_ref[...].astype(jnp.float32)                          # (bb, D)
    tss = jnp.sum(txt_f * txt_f, axis=-1, keepdims=True)
    tscale = jax.lax.rsqrt(jnp.maximum(tss, eps2))
    txt_n = (txt_f * tscale).astype(dot_dtype)

    img_n = img_cache_ref[...]

    # ---- logits tile on the MXU: contract last dims, no explicit transpose ----
    s = jax.lax.dot_general(
        img_n, txt_n,
        dimension_numbers=(((1,), (1,)), ((), ())),
        preferred_element_type=jnp.float32)                           # (bb, bb) f32

    # ---- diagonal ("correct pair") logits — only on diagonal tiles, no masks ----
    @pl.when(i == j)
    def _diag():
        d = jnp.sum(img_n.astype(jnp.float32) * txt_n.astype(jnp.float32),
                    keepdims=True)                                    # (1, 1)
        diag_ref[...] = diag_ref[...] + d

    if fixed_shift:
        # |logit| <= 1/T, so exp(s - 1/T) never overflows and never fully
        # underflows for 2/T < ~80: a single exp per tile serves BOTH softmaxes.
        p = jnp.exp(s - inv_t)                                        # (bb, bb)
        l_row_ref[...] = l_row_ref[...] + jnp.sum(p, axis=1, keepdims=True)
        # per-(i, j) column partial: sum over this tile's rows of exp(s - C)
        col_ref[...] = jnp.sum(p, axis=0, keepdims=True).reshape(col_ref.shape)

        @pl.when(j == n_j - 1)
        def _finish_row_sweep():
            lse_row = inv_t + jnp.log(l_row_ref[...])                 # (bb, 1)
            peri_ref[...] = (jnp.sum(lse_row, keepdims=True)
                             - 2.0 * diag_ref[...]).reshape(peri_ref.shape)
    else:
        # General path: online max along rows, per-tile LSE along columns.
        m_prev = m_row_ref[...]
        m_new = jnp.maximum(m_prev, jnp.max(s, axis=1, keepdims=True))
        l_row_ref[...] = (jnp.exp(m_prev - m_new) * l_row_ref[...]
                          + jnp.sum(jnp.exp(s - m_new), axis=1, keepdims=True))
        m_row_ref[...] = m_new

        mc = jnp.max(s, axis=0, keepdims=True)                        # (1, bb)
        col_lse = mc + jnp.log(jnp.sum(jnp.exp(s - mc), axis=0, keepdims=True))
        col_ref[...] = col_lse.reshape(col_ref.shape)

        @pl.when(j == n_j - 1)
        def _finish_row_sweep():
            lse_row = m_row_ref[...] + jnp.log(l_row_ref[...])
            peri_ref[...] = (jnp.sum(lse_row, keepdims=True)
                             - 2.0 * diag_ref[...]).reshape(peri_ref.shape)


# Conservative VMEM budgeting: fits v7x's 64 MiB physical VMEM per TensorCore and
# comfortably inside v5e/v6e's 128 MiB once the default scoped limit is raised.
_VMEM_BUDGET = 40 * 1024 * 1024
_VMEM_LIMIT = 48 * 1024 * 1024


def _vmem_bytes_estimate(block_b, d, in_bytes, dot_bytes):
    return (2 * 2 * block_b * d * in_bytes      # img + txt inputs, double-buffered
            + block_b * d * dot_bytes           # img_cache scratch
            + 2 * block_b * d * 4               # f32 text-normalization temporaries
            + 3 * block_b * block_b * 4         # s, exp(s), reduction temporaries
            + 4 * block_b * 4                   # l_row, m_row scratch
            + 4 * block_b * 4)                  # column-partial out block buffers


def _pick_block(b, d, in_bytes, dot_bytes):
    # Largest MXU-friendly tile (multiples of 128) that fits the VMEM budget.
    for t in (1024, 512, 256, 128):
        if b % t == 0 and _vmem_bytes_estimate(t, d, in_bytes, dot_bytes) <= _VMEM_BUDGET:
            return t
    # Small / irregular batches: a single tile covering the whole batch.
    if _vmem_bytes_estimate(b, d, in_bytes, dot_bytes) > _VMEM_BUDGET:
        # TODO(synk): pad irregular large batches to a multiple of 128 instead.
        raise ValueError(
            f"batch={b} is not a multiple of 128 and is too large for a single "
            f"VMEM tile; pad the batch to a multiple of 128.")
    return b


def clip_loss(image_embeddings, text_embeddings, temperature=0.07,
              matmul_dtype=None):
    assert image_embeddings.shape[1] == text_embeddings.shape[1], (
        "d_model of both imgs and text need to be the same")
    assert image_embeddings.shape[0] == text_embeddings.shape[0], (
        "CLIP loss needs matched image/text batch sizes")
    b, d = image_embeddings.shape

    in_dtype = image_embeddings.dtype
    dot_dtype = jnp.dtype(matmul_dtype) if matmul_dtype is not None else jnp.dtype(in_dtype)
    in_bytes = jnp.dtype(in_dtype).itemsize
    dot_bytes = dot_dtype.itemsize

    block_b = _pick_block(b, d, in_bytes, dot_bytes)
    n_blk = b // block_b

    # Bounded-logit fast path (single exp per tile); falls back to the
    # online-max / per-tile-LSE path when exp(-2/T) could underflow.
    try:
        fixed_shift = (2.0 / float(temperature)) < 80.0
    except TypeError:
        fixed_shift = False

    # temperature as a runtime SMEM scalar: no recompile per value.
    temp = jnp.full((1,), temperature, dtype=jnp.float32)

    kernel = functools.partial(_clip_loss_kernel, fixed_shift=fixed_shift)
    per_i, col_part = pl.pallas_call(
        kernel,
        out_shape=(jax.ShapeDtypeStruct((n_blk, 1, 1), jnp.float32),
                   jax.ShapeDtypeStruct((n_blk, 1, b), jnp.float32)),
        grid_spec=pltpu.PrefetchScalarGridSpec(
            num_scalar_prefetch=1,
            grid=(n_blk, n_blk),
            in_specs=[
                pl.BlockSpec((block_b, d), lambda i, j, temp: (i, 0)),   # image rows
                pl.BlockSpec((block_b, d), lambda i, j, temp: (j, 0)),   # text cols
            ],
            out_specs=[
                # per row tile: sum_rows(LSE_row) - 2*sum(diag logits)
                pl.BlockSpec((1, 1, 1), lambda i, j, temp: (i, 0, 0)),
                # per (i, j) tile: column partials (sums of exp or per-tile LSEs)
                pl.BlockSpec((1, 1, block_b), lambda i, j, temp: (i, 0, j)),
            ],
            scratch_shapes=[
                pltpu.VMEM((block_b, d), dot_dtype),     # normalized, temp-scaled img
                pltpu.VMEM((block_b, 1), jnp.float32),   # l_row
                pltpu.VMEM((block_b, 1), jnp.float32),   # m_row (online-max path only)
                pltpu.VMEM((1, 1), jnp.float32),         # diag accumulator
            ]),
        compiler_params=pltpu.CompilerParams(
            # No cross-row-tile state inside the kernel -> i can be megacore-
            # parallel on v7x; j carries the row-sweep accumulators.
            dimension_semantics=("parallel", "arbitrary"),
            vmem_limit_bytes=_VMEM_LIMIT),
    )(temp, image_embeddings, text_embeddings)

    # O(n_blk * B) combine of the per-row-tile partials (done in plain JAX so the
    # kernel's i axis stays parallel).
    col_part = col_part[:, 0, :]                                      # (n_blk, B)
    if fixed_shift:
        col_lse = 1.0 / temperature + jnp.log(jnp.sum(col_part, axis=0))
    else:
        col_lse = jax.nn.logsumexp(col_part, axis=0)
    loss = (jnp.sum(per_i) + jnp.sum(col_lse)) / (2.0 * b)
    return loss


def _ref_clip_loss(img, txt, temperature):
    """Pure-JAX reference matching the PyTorch module."""
    img_n = img / jnp.maximum(jnp.linalg.norm(img, axis=-1, keepdims=True), 1e-12)
    txt_n = txt / jnp.maximum(jnp.linalg.norm(txt, axis=-1, keepdims=True), 1e-12)
    logits = (img_n @ txt_n.T) / temperature
    labels = jnp.arange(img.shape[0])
    li2t = -jnp.mean(jax.nn.log_softmax(logits, axis=-1)[labels, labels])
    lt2i = -jnp.mean(jax.nn.log_softmax(logits.T, axis=-1)[labels, labels])
    return (li2t + lt2i) / 2


if __name__ == "__main__":
    key = jax.random.PRNGKey(0)

    # 1) Small single-tile case (fast bounded-logit path).
    k_img, k_txt = jax.random.split(key)
    B, D = 8, 32
    image_embeddings = jax.random.normal(k_img, (B, D), dtype=jnp.float32)
    text_embeddings = jax.random.normal(k_txt, (B, D), dtype=jnp.float32)
    loss = clip_loss(image_embeddings, text_embeddings, temperature=0.07)
    jax.block_until_ready(loss)
    ref = _ref_clip_loss(image_embeddings, text_embeddings, 0.07)
    assert jnp.allclose(loss, ref, atol=1e-3, rtol=1e-3), (loss, ref)

    # 2) Multi-tile case exercising the tiled path (3x3 grid, fast path).
    k_img2, k_txt2 = jax.random.split(jax.random.PRNGKey(1))
    B2, D2 = 384, 64
    img2 = jax.random.normal(k_img2, (B2, D2), dtype=jnp.float32)
    txt2 = jax.random.normal(k_txt2, (B2, D2), dtype=jnp.float32)
    loss2 = clip_loss(img2, txt2, temperature=0.07)
    jax.block_until_ready(loss2)
    ref2 = _ref_clip_loss(img2, txt2, 0.07)
    assert jnp.allclose(loss2, ref2, atol=1e-3, rtol=1e-3), (loss2, ref2)

    # 3) Tiny temperature forces the online-max / per-tile-LSE fallback path.
    loss3 = clip_loss(img2, txt2, temperature=0.01)
    jax.block_until_ready(loss3)
    ref3 = _ref_clip_loss(img2, txt2, 0.01)
    assert jnp.allclose(loss3, ref3, atol=1e-3, rtol=1e-3), (loss3, ref3)

    print("KERNEL_OK")
</pallas_src>

<mosaic_0001>
module attributes {stable_mosaic.version = 11 : i64} {
  func.func @_clip_loss_kernel(%arg0: i32, %arg1: i32, %arg2: memref<1xf32, #tpu.memory_space<smem>>, %arg3: memref<8x32xf32, #tpu.memory_space<vmem>>, %arg4: memref<8x32xf32, #tpu.memory_space<vmem>>, %arg5: memref<1x1x1xf32, #tpu.memory_space<vmem>>, %arg6: memref<1x1x8xf32, #tpu.memory_space<vmem>>, %arg7: memref<8x32xf32, #tpu.memory_space<vmem>>, %arg8: memref<8x1xf32, #tpu.memory_space<vmem>>, %arg9: memref<8x1xf32, #tpu.memory_space<vmem>>, %arg10: memref<1x1xf32, #tpu.memory_space<vmem>>) attributes {dimension_semantics = [#tpu.dimension_semantics<parallel>, #tpu.dimension_semantics<arbitrary>], iteration_bounds = array<i64: 1, 1>, scalar_prefetch = 1 : i64, scratch_operands = 4 : i64, tpu.core_type = #tpu.core_type<tc>, window_params = [{transform_indices = @transform_0, window_bounds = array<i64: 8, 32>}, {transform_indices = @transform_1, window_bounds = array<i64: 8, 32>}, {transform_indices = @transform_2, window_bounds = array<i64: 1, 1, 1>}, {transform_indices = @transform_3, window_bounds = array<i64: 1, 1, 8>}]} {
    %c0 = arith.constant 0 : index
    %0 = memref.load %arg2[%c0] : memref<1xf32, #tpu.memory_space<smem>>
    %cst = arith.constant 1.000000e+00 : f32
    %1 = arith.divf %cst, %0 : f32
    %c0_i32 = arith.constant 0 : i32
    %2 = arith.cmpi eq, %arg1, %c0_i32 : i32
    %3 = arith.extui %2 : i1 to i32
    %cst_0 = arith.constant 1.000000e-24 : f32
    %c0_i32_1 = arith.constant 0 : i32
    %4 = arith.cmpi ne, %3, %c0_i32_1 : i32
    scf.if %4 {
      %c0_21 = arith.constant 0 : index
      %c0_22 = arith.constant 0 : index
      %34 = vector.load %arg3[%c0_21, %c0_22] : memref<8x32xf32, #tpu.memory_space<vmem>>, vector<8x32xf32>
      %35 = arith.mulf %34, %34 : vector<8x32xf32>
      %cst_23 = arith.constant dense<0.000000e+00> : vector<8xf32>
      %36 = vector.multi_reduction <add>, %35, %cst_23 [1] : vector<8x32xf32> to vector<8xf32>
      %37 = vector.shape_cast %36 : vector<8xf32> to vector<8x1xf32>
      %38 = vector.broadcast %cst_0 : f32 to vector<8x1xf32>
      %39 = arith.maximumf %37, %38 : vector<8x1xf32>
      %40 = math.rsqrt %39 : vector<8x1xf32>
      %41 = vector.broadcast %1 : f32 to vector<8x1xf32>
      %42 = arith.mulf %40, %41 : vector<8x1xf32>
      %43 = vector.broadcast %42 : vector<8x1xf32> to vector<8x32xf32>
      %44 = arith.mulf %34, %43 : vector<8x32xf32>
      %c0_24 = arith.constant 0 : index
      %c0_25 = arith.constant 0 : index
      %45 = vector.load %arg7[%c0_24, %c0_25] : memref<8x32xf32, #tpu.memory_space<vmem>>, vector<8x32xf32>
      tpu.vector_store %arg7[%c0_24, %c0_25], %44 {strides = array<i32>} : memref<8x32xf32, #tpu.memory_space<vmem>>, vector<8x32xf32>,
      %cst_26 = arith.constant 0.000000e+00 : f32
      %46 = vector.broadcast %cst_26 : f32 to vector<8x1xf32>
      %c0_27 = arith.constant 0 : index
      %c0_28 = arith.constant 0 : index
      %47 = vector.load %arg8[%c0_27, %c0_28] : memref<8x1xf32, #tpu.memory_space<vmem>>, vector<8x1xf32>
      tpu.vector_store %arg8[%c0_27, %c0_28], %46 {strides = array<i32>} : memref<8x1xf32, #tpu.memory_space<vmem>>, vector<8x1xf32>,
      %cst_29 = arith.constant 0.000000e+00 : f32
      %48 = vector.broadcast %cst_29 : f32 to vector<1x1xf32>
      %c0_30 = arith.constant 0 : index
      %c0_31 = arith.constant 0 : index
      %49 = vector.load %arg10[%c0_30, %c0_31] : memref<1x1xf32, #tpu.memory_space<vmem>>, vector<1x1xf32>
      tpu.vector_store %arg10[%c0_30, %c0_31], %48 {strides = array<i32>} : memref<1x1xf32, #tpu.memory_space<vmem>>, vector<1x1xf32>,
    } else {
    }
    %c0_2 = arith.constant 0 : index
    %c0_3 = arith.constant 0 : index
    %5 = vector.load %arg4[%c0_2, %c0_3] : memref<8x32xf32, #tpu.memory_space<vmem>>, vector<8x32xf32>
    %6 = arith.mulf %5, %5 : vector<8x32xf32>
    %cst_4 = arith.constant dense<0.000000e+00> : vector<8xf32>
    %7 = vector.multi_reduction <add>, %6, %cst_4 [1] : vector<8x32xf32> to vector<8xf32>
    %8 = vector.shape_cast %7 : vector<8xf32> to vector<8x1xf32>
    %cst_5 = arith.constant 1.000000e-24 : f32
    %9 = vector.broadcast %cst_5 : f32 to vector<8x1xf32>
    %10 = arith.maximumf %8, %9 : vector<8x1xf32>
    %11 = math.rsqrt %10 : vector<8x1xf32>
    %12 = vector.broadcast %11 : vector<8x1xf32> to vector<8x32xf32>
    %13 = arith.mulf %5, %12 : vector<8x32xf32>
    %c0_6 = arith.constant 0 : index
    %c0_7 = arith.constant 0 : index
    %14 = vector.load %arg7[%c0_6, %c0_7] : memref<8x32xf32, #tpu.memory_space<vmem>>, vector<8x32xf32>
    %cst_8 = arith.constant dense<0.000000e+00> : vector<8x8xf32>
    %15 = tpu.matmul %14, %13, %cst_8 {dimension_numbers = #tpu.dot_dimension_numbers<[1], [1], [0], [0], [0, 0, 1, 0], [], []>} : vector<8x32xf32>, vector<8x32xf32>, vector<8x8xf32> -> vector<8x8xf32>
    %16 = arith.cmpi eq, %arg0, %arg1 : i32
    %17 = arith.extui %16 : i1 to i32
    %c0_i32_9 = arith.constant 0 : i32
    %18 = arith.cmpi ne, %17, %c0_i32_9 : i32
    scf.if %18 {
      %34 = arith.mulf %14, %13 : vector<8x32xf32>
      %35 = vector.shape_cast %34 : vector<8x32xf32> to vector<1x8x32xf32>
      %cst_21 = arith.constant dense<0.000000e+00> : vector<1xf32>
      %36 = vector.multi_reduction <add>, %35, %cst_21 [1, 2] : vector<1x8x32xf32> to vector<1xf32>
      %37 = vector.shape_cast %36 : vector<1xf32> to vector<1x1x1xf32>
      %38 = vector.extract %37[0, 0, 0] : f32 from vector<1x1x1xf32>
      %39 = vector.broadcast %38 : f32 to vector<1x1xf32>
      %c0_22 = arith.constant 0 : index
      %c0_23 = arith.constant 0 : index
      %40 = vector.load %arg10[%c0_22, %c0_23] : memref<1x1xf32, #tpu.memory_space<vmem>>, vector<1x1xf32>
      %41 = arith.addf %40, %39 : vector<1x1xf32>
      %c0_24 = arith.constant 0 : index
      %c0_25 = arith.constant 0 : index
      %42 = vector.load %arg10[%c0_24, %c0_25] : memref<1x1xf32, #tpu.memory_space<vmem>>, vector<1x1xf32>
      tpu.vector_store %arg10[%c0_24, %c0_25], %41 {strides = array<i32>} : memref<1x1xf32, #tpu.memory_space<vmem>>, vector<1x1xf32>,
    } else {
    }
    %19 = vector.broadcast %1 : f32 to vector<8x8xf32>
    %20 = arith.subf %15, %19 : vector<8x8xf32>
    %21 = math.exp %20 : vector<8x8xf32>
    %c0_10 = arith.constant 0 : index
    %c0_11 = arith.constant 0 : index
    %22 = vector.load %arg8[%c0_10, %c0_11] : memref<8x1xf32, #tpu.memory_space<vmem>>, vector<8x1xf32>
    %cst_12 = arith.constant dense<0.000000e+00> : vector<8xf32>
    %23 = vector.multi_reduction <add>, %21, %cst_12 [1] : vector<8x8xf32> to vector<8xf32>
    %24 = vector.shape_cast %23 : vector<8xf32> to vector<8x1xf32>
    %25 = arith.addf %22, %24 : vector<8x1xf32>
    %c0_13 = arith.constant 0 : index
    %c0_14 = arith.constant 0 : index
    %26 = vector.load %arg8[%c0_13, %c0_14] : memref<8x1xf32, #tpu.memory_space<vmem>>, vector<8x1xf32>
    tpu.vector_store %arg8[%c0_13, %c0_14], %25 {strides = array<i32>} : memref<8x1xf32, #tpu.memory_space<vmem>>, vector<8x1xf32>,
    %cst_15 = arith.constant dense<0.000000e+00> : vector<8xf32>
    %27 = vector.multi_reduction <add>, %21, %cst_15 [0] : vector<8x8xf32> to vector<8xf32>
    %28 = vector.shape_cast %27 : vector<8xf32> to vector<1x8xf32>
    %29 = vector.shape_cast %28 : vector<1x8xf32> to vector<1x1x8xf32>
    %c0_16 = arith.constant 0 : index
    %c0_17 = arith.constant 0 : index
    %c0_18 = arith.constant 0 : index
    %30 = vector.load %arg6[%c0_16, %c0_17, %c0_18] : memref<1x1x8xf32, #tpu.memory_space<vmem>>, vector<1x1x8xf32>
    tpu.vector_store %arg6[%c0_16, %c0_17, %c0_18], %29 {strides = array<i32>} : memref<1x1x8xf32, #tpu.memory_space<vmem>>, vector<1x1x8xf32>,
    %c0_i32_19 = arith.constant 0 : i32
    %31 = arith.cmpi eq, %arg1, %c0_i32_19 : i32
    %32 = arith.extui %31 : i1 to i32
    %c0_i32_20 = arith.constant 0 : i32
    %33 = arith.cmpi ne, %32, %c0_i32_20 : i32
    scf.if %33 {
      %c0_21 = arith.constant 0 : index
      %c0_22 = arith.constant 0 : index
      %34 = vector.load %arg8[%c0_21, %c0_22] : memref<8x1xf32, #tpu.memory_space<vmem>>, vector<8x1xf32>
      %35 = math.log %34 : vector<8x1xf32>
      %36 = vector.broadcast %1 : f32 to vector<8x1xf32>
      %37 = arith.addf %36, %35 : vector<8x1xf32>
      %38 = vector.shape_cast %37 : vector<8x1xf32> to vector<1x8x1xf32>
      %cst_23 = arith.constant dense<0.000000e+00> : vector<1xf32>
      %39 = vector.multi_reduction <add>, %38, %cst_23 [1, 2] : vector<1x8x1xf32> to vector<1xf32>
      %40 = vector.shape_cast %39 : vector<1xf32> to vector<1x1x1xf32>
      %41 = vector.extract %40[0, 0, 0] : f32 from vector<1x1x1xf32>
      %42 = vector.broadcast %41 : f32 to vector<1x1xf32>
      %c0_24 = arith.constant 0 : index
      %c0_25 = arith.constant 0 : index
      %43 = vector.load %arg10[%c0_24, %c0_25] : memref<1x1xf32, #tpu.memory_space<vmem>>, vector<1x1xf32>
      %cst_26 = arith.constant 2.000000e+00 : f32
      %44 = vector.broadcast %cst_26 : f32 to vector<1x1xf32>
      %45 = arith.mulf %44, %43 : vector<1x1xf32>
      %46 = arith.subf %42, %45 : vector<1x1xf32>
      %47 = vector.shape_cast %46 : vector<1x1xf32> to vector<1x1x1xf32>
      %c0_27 = arith.constant 0 : index
      %c0_28 = arith.constant 0 : index
      %c0_29 = arith.constant 0 : index
      %48 = vector.load %arg5[%c0_27, %c0_28, %c0_29] : memref<1x1x1xf32, #tpu.memory_space<vmem>>, vector<1x1x1xf32>
      tpu.vector_store %arg5[%c0_27, %c0_28, %c0_29], %47 {strides = array<i32>} : memref<1x1x1xf32, #tpu.memory_space<vmem>>, vector<1x1x1xf32>,
    } else {
    }
    return
  }
  func.func @transform_0(%arg0: i32, %arg1: i32, %arg2: memref<1xf32, #tpu.memory_space<smem>>) -> (i32, i32) {
    %c0_i32 = arith.constant 0 : i32
    %c0_i32_0 = arith.constant 0 : i32
    return %arg0, %c0_i32 : i32, i32
  }
  func.func @transform_1(%arg0: i32, %arg1: i32, %arg2: memref<1xf32, #tpu.memory_space<smem>>) -> (i32, i32) {
    %c0_i32 = arith.constant 0 : i32
    %c0_i32_0 = arith.constant 0 : i32
    return %arg1, %c0_i32 : i32, i32
  }
  func.func @transform_2(%arg0: i32, %arg1: i32, %arg2: memref<1xf32, #tpu.memory_space<smem>>) -> (i32, i32, i32) {
    %c0_i32 = arith.constant 0 : i32
    %c0_i32_0 = arith.constant 0 : i32
    %c0_i32_1 = arith.constant 0 : i32
    return %arg0, %c0_i32, %c0_i32_0 : i32, i32, i32
  }
  func.func @transform_3(%arg0: i32, %arg1: i32, %arg2: memref<1xf32, #tpu.memory_space<smem>>) -> (i32, i32, i32) {
    %c0_i32 = arith.constant 0 : i32
    %c0_i32_0 = arith.constant 0 : i32
    return %arg0, %c0_i32, %arg1 : i32, i32, i32
  }
}

</mosaic_0001>

<llo_original>
// kernel: tpu_custom_call.1
$region0: #{tpu_custom_call.1}
  #allocation0 [shape = 'u32[]', space=smem, size = 0x4, offset = 0x4, fixed_abs, tag = 'smem constant byte address 0x4 - core index']
  #allocation1 [shape = 'u32[72,128]{1,0:T(1,128)}', space=vmem, size = 0x9000, scoped, tag = 'internal scratch']
  #allocation2 [shape = 'f32[8,32]{1,0:T(8,128)}', space=vmem, size = 0x1000, scoped, tag = 'scratch operand']
  #allocation3 [shape = 'f32[8,1]{1,0:T(8,128)}', space=vmem, size = 0x1000, scoped, tag = 'scratch operand']
  #allocation4 [shape = 'f32[8,1]{1,0:T(8,128)}', space=vmem, size = 0x1000, scoped, tag = 'scratch operand']
  #allocation5 [shape = 'f32[1,1]{1,0:T(1,128)}', space=vmem, size = 0x200, scoped, tag = 'scratch operand']
  #allocation6 [shape = 's32[1]{0}', space=sflag, size = 0x4, scoped, tag = 'scoped memory for tpu_custom_call.1']
  #allocation7 [shape = 'f32[1]{0:T(128)S(6)}', space=smem, size = 0x200, scoped, tag = 'prefetched SMEM operand 0']
  %s0 = inlined_call_operand.<no memory space> [shape: f32[1], index: 0, kind: input, shape index: {}]
  %s1 = inlined_call_operand.hbm [shape: f32[8,32], index: 1, kind: input, shape index: {}]
  %s2 = inlined_call_operand.hbm [shape: f32[8,32], index: 2, kind: input, shape index: {}]
  %s3 = inlined_call_operand.hbm [shape: f32[1,1,1], index: 3, kind: output, shape index: {0}]
  %s4 = inlined_call_operand.hbm [shape: f32[1,1,8], index: 4, kind: output, shape index: {1}]
  %5 = xla_tuple %s3, %s4
  %s6 = sld [smem:[#allocation0]]
  $region46: #{tpu_custom_call.1} parent=0
    _
  %s8 = ssub.s32 1, %s6
  %s9 = scalar_select 0, %s8, %s6
  %10 = sst [smem:[#allocation7]] %s0
  $region1: #{tpu_custom_call.1} parent=0
    #allocation8 [shape = 'u8[4096]{0}', space=vmem, size = 0x1000, scoped, tag = 'input window, operand 1, single buffered']
    #allocation9 [shape = 's32[1]{0}', space=sflag, size = 0x4, scoped, tag = 'scoped memory for tpu_custom_call.1']
    #allocation10 [shape = 's32[1]{0}', space=sflag, size = 0x4, scoped, tag = 'scoped memory for tpu_custom_call.1']
    #allocation11 [shape = 'u8[4096]{0}', space=vmem, size = 0x1000, scoped, tag = 'input window, operand 2, single buffered']
    #allocation12 [shape = 's32[1]{0}', space=sflag, size = 0x4, scoped, tag = 'scoped memory for tpu_custom_call.1']
    #allocation13 [shape = 'u8[512]{0}', space=vmem, size = 0x400, scoped, tag = 'output window, operand 0, single buffered']
    #allocation14 [shape = 'u8[512]{0}', space=vmem, size = 0x400, scoped, tag = 'output window, operand 1, single buffered']
    #allocation15 [shape = 's32[1]{0}', space=sflag, size = 0x4, scoped, tag = 'scoped memory for tpu_custom_call.1']
    %11 = vsyncpa [#allocation9], 0
    %12 = vsyncpa [#allocation12], 0
    %13 = vsyncpa [#allocation10], 0
    %14 = vsyncpa [#allocation15], 0
    // Predicated region
    $region2: #{tpu_custom_call.1} parent=1 // pred_check
      _
    $region3: #{tpu_custom_call.1} parent=1 // pred_check_branch
      %16 = sbr.rel (0) target = $region5
    $region4: #{tpu_custom_call.1} parent=1 // pred_region
      %18 = vsyncadd [#allocation9], 0
      %s20 = sshll.u32 %s1, 4
      %s21 = int_to_ptr.hbm [resolvable:$true] %s20
      %s22 = sshll.u32 [#allocation8], 4
      %s23 = int_to_ptr.vmem [resolvable:$true] %s22
      %25 = dma.hbm_to_vmem [thread:$0]  %s21, 128, %s23, [#allocation9]
    $region5: #{tpu_custom_call.1} parent=1 // pred_fallthru
      _
    // Predicated region
    $region6: #{tpu_custom_call.1} parent=1 // pred_check
      _
    $region7: #{tpu_custom_call.1} parent=1 // pred_check_branch
      %27 = sbr.rel (0) target = $region9
    $region8: #{tpu_custom_call.1} parent=1 // pred_region
      %29 = vsyncadd [#allocation12], 0
      %s31 = sshll.u32 %s2, 4
      %s32 = int_to_ptr.hbm [resolvable:$true] %s31
      %s33 = sshll.u32 [#allocation11], 4
      %s34 = int_to_ptr.vmem [resolvable:$true] %s33
      %36 = dma.hbm_to_vmem [thread:$0]  %s32, 128, %s34, [#allocation12]
    $region9: #{tpu_custom_call.1} parent=1 // pred_fallthru
      _
    // Predicated region
    $region10: #{tpu_custom_call.1} parent=1 // pred_check
      _
    $region11: #{tpu_custom_call.1} parent=1 // pred_check_branch
      %38 = sbr.rel (0) target = $region13
    $region12: #{tpu_custom_call.1} parent=1 // pred_region
      %40 = dma.done [#allocation9], 128
    $region13: #{tpu_custom_call.1} parent=1 // pred_fallthru
      _
    // Predicated region
    $region14: #{tpu_custom_call.1} parent=1 // pred_check
      _
    $region15: #{tpu_custom_call.1} parent=1 // pred_check_branch
      %42 = sbr.rel (0) target = $region17
    $region16: #{tpu_custom_call.1} parent=1 // pred_region
      %44 = dma.done [#allocation12], 128
    $region17: #{tpu_custom_call.1} parent=1 // pred_fallthru
      _
    %s45 = sld [smem:[#allocation7]]
    %v46 = vstv %s45
    %v47 = vrcp.pop %v46
    %v48 = vmul.f32 %v46, %v47
    %v49 = vsub.f32 1.0, %v48
    %v50 = vmul.f32 %v47, %v49
    %v51 = vadd.f32 %v47, %v50
    %vm52 = vweird.f32 %v46
    %vm53 = vweird.f32 %v47
    %vm54 = vmor %vm52, %vm53
    %v55 = vsel %vm54, %v47, %v51
    %v56 = vand.u32 2147483647, %v46
    %vm57 = vcmp.eq.f32.partialorder %v56, 8.507059e+37
    %v58 = vand.u32 %v46, 2147483648
    %v59 = vor.u32 1.1754944e-38, %v58
    %v60 = vsel %vm57, %v59, %v55
    %s61 = vtos %v60
    %p62 = scmp.eq.s32.totalorder 0, 0
    // Predicated region
    $region18: #{tpu_custom_call.1} parent=1 // pred_check
      %p63 = pneg %p62
    $region19: #{tpu_custom_call.1} parent=1 // pred_check_branch
      %65 = sbr.rel (%p63) target = $region21
    $region20: #{tpu_custom_call.1} parent=1 // pred_region
      %v66 = vld [vmem:[#allocation8] sm:$0xff]
      %v67 = vmul.f32 %v66, %v66
      %vm68 = vcmask 261120
      %v69 = vsel %vm68, %v67, 0.0
      %70 = vadd.xlane.f32.xlu0 %v69
      %v71 = vpop.xlane.xlu0 %70
      %v72 = vmax.f32 %v71, 1e-24
      %v73 = vrsqrt.pop %v72
      %v74 = vmul.f32 %v73, %v72
      %v75 = vmul.f32 %v74, %v73
      %v76 = vmul.f32 0.5, %v75
      %v77 = vsub.f32 1.5, %v76
      %v78 = vmul.f32 %v73, %v77
      %vm79 = vweird.f32 %v72
      %vm80 = vweird.f32 %v73
      %vm81 = vmor %vm79, %vm80
      %v82 = vsel %vm81, %v73, %v78
      %v83 = vstv %s61
      %v84 = vmul.f32 %v82, %v83
      %v85 = vmul.f32 %v66, %v84
      %86 = vst.msk [vmem:[#allocation2] sm:$0xff] %vm68, %v85
      %vm87 = vcmask 7168
      %88 = vst.msk [vmem:[#allocation3] sm:$0xff] %vm87, 0.0
      %vm89 = vcmask 0
      %90 = vst.msk [vmem:[#allocation5] sm:$0x1] %vm89, 0.0
    $region21: #{tpu_custom_call.1} parent=1 // pred_fallthru
      _
    %v91 = vld [vmem:[#allocation11] sm:$0xff]
    %v92 = vmul.f32 %v91, %v91
    %vm93 = vcmask 261120
    %v94 = vsel %vm93, %v92, 0.0
    %95 = vadd.xlane.f32.xlu0 %v94
    %v96 = vpop.xlane.xlu0 %95
    %v97 = vmax.f32 %v96, 1e-24
    %v98 = vrsqrt.pop %v97
    %v99 = vmul.f32 %v98, %v97
    %v100 = vmul.f32 %v99, %v98
    %v101 = vmul.f32 0.5, %v100
    %v102 = vsub.f32 1.5, %v101
    %v103 = vmul.f32 %v98, %v102
    %vm104 = vweird.f32 %v97
    %vm105 = vweird.f32 %v98
    %vm106 = vmor %vm104, %vm105
    %v107 = vsel %vm106, %v98, %v103
    %v108 = vmul.f32 %v91, %v107
    %v109 = vld [vmem:[#allocation2] sm:$0xff]
    %v111 = vsel %vm93, %v109, 0
    %v114 = vsel %vm93, %v108, 0
    %116 = vmatpush.xpose.msra.mxu0 0.0
    %117 = vmatpush.xpose.msra.mxu0 0.0
    %118 = vmatpush.xpose.msra.mxu0 0.0
    %119 = vmatpush.xpose.msra.mxu0 0.0
    %120 = vmatpush.xpose.msra.mxu0 0.0
    %121 = vmatpush.xpose.msra.mxu0 0.0
    %122 = vmatpush.xpose.msra.mxu0 0.0
    %123 = vmatpush.xpose.msra.mxu0 0.0
    %124 = vmatpush.xpose.msra.mxu0 0.0
    %125 = vmatpush.xpose.msra.mxu0 0.0
    %126 = vmatpush.xpose.msra.mxu0 0.0
    %127 = vmatpush.xpose.msra.mxu0 0.0
    %128 = vmatpush.xpose.msra.mxu0 0.0
    %129 = vmatpush.xpose.msra.mxu0 0.0
    %130 = vmatpush.xpose.msra.mxu0 0.0
    %131 = vmatpush.xpose.msra.mxu0 %v114
    %132 = vmatmul.f32.gmra.mxu0 %v111
    %v133 = vpop.f32.mrf.mxu0
    %v134 = vadd.f32 0.0, %v133
    %135 = vdwg.mxu0
    %p136 = scmp.eq.s32.totalorder 0, 0
    // Predicated region
    $region22: #{tpu_custom_call.1} parent=1 // pred_check
      %p137 = pneg %p136
    $region23: #{tpu_custom_call.1} parent=1 // pred_check_branch
      %139 = sbr.rel (%p137) target = $region25
    $region24: #{tpu_custom_call.1} parent=1 // pred_region
      %v140 = vmul.f32 %v109, %v108
      %v141 = vsel %vm93, %v140, 0.0
      %142 = vadd.xlane.f32.xlu0 %v141
      %v143 = vpop.xlane.xlu0 %142
      %v144 = vrot.slane %v143, 4
      %v145 = vadd.f32 %v143, %v144
      %v146 = vrot.slane %v145, 2
      %v147 = vadd.f32 %v145, %v146
      %v148 = vrot.slane %v147, 1
      %v149 = vadd.f32 %v147, %v148
      %s150 = vtos %v149
      %v151 = vstv %s150
      %v152 = vld [vmem:[#allocation5] sm:$0x1]
      %v153 = vadd.f32 %v152, %v151
      %vm154 = vcmask 0
      %155 = vst.msk [vmem:[#allocation5] sm:$0x1] %vm154, %v153
    $region25: #{tpu_custom_call.1} parent=1 // pred_fallthru
      _
    %v156 = vstv %s61
    %v157 = vsub.f32 %v134, %v156
    %v158 = vmul.f32 %v157, 1.442695
    %v159 = vpow.pop %v158
    %v160 = vld [vmem:[#allocation3] sm:$0xff]
    %vm161 = vcmask 64512
    %v162 = vsel %vm161, %v159, 0.0
    %163 = vadd.xlane.f32.xlu0 %v162
    %v164 = vpop.xlane.xlu0 %163
    %v165 = vadd.f32 %v160, %v164
    %vm166 = vcmask 7168
    %167 = vst.msk [vmem:[#allocation3] sm:$0xff] %vm166, %v165
    %v168 = vrot.slane %v162, 4
    %v169 = vadd.f32 %v162, %v168
    %v170 = vrot.slane %v169, 2
    %v171 = vadd.f32 %v169, %v170
    %v172 = vrot.slane %v171, 1
    %v173 = vadd.f32 %v171, %v172
    %vm174 = vcmask 57344
    %175 = vst.msk [vmem:[#allocation14] sm:$0x1] %vm174, %v173
    // Predicated region
    $region26: #{tpu_custom_call.1} parent=1 // pred_check
      %p176 = pneg %p62
    $region27: #{tpu_custom_call.1} parent=1 // pred_check_branch
      %178 = sbr.rel (%p176) target = $region29
    $region28: #{tpu_custom_call.1} parent=1 // pred_region
      %v179 = vld [vmem:[#allocation3] sm:$0xff]
      %v180 = vlog2.pop %v179
      %v181 = vmul.f32 %v180, 0.6931472
      %v182 = vadd.f32 %v156, %v181
      %v183 = vsel %vm166, %v182, 0.0
      %184 = vadd.xlane.f32.xlu0 %v183
      %v185 = vpop.xlane.xlu0 %184
      %v186 = vrot.slane %v185, 4
      %v187 = vadd.f32 %v185, %v186
      %v188 = vrot.slane %v187, 2
      %v189 = vadd.f32 %v187, %v188
      %v190 = vrot.slane %v189, 1
      %v191 = vadd.f32 %v189, %v190
      %s192 = vtos %v191
      %v193 = vstv %s192
      %v194 = vld [vmem:[#allocation5] sm:$0x1]
      %v195 = vmul.f32 %v194, 2.0
      %v196 = vsub.f32 %v193, %v195
      %vm197 = vcmask 0
      %198 = vst.msk [vmem:[#allocation13] sm:$0x1] %vm197, %v196
    $region29: #{tpu_custom_call.1} parent=1 // pred_fallthru
      _
    // Predicated region
    $region30: #{tpu_custom_call.1} parent=1 // pred_check
      _
    $region31: #{tpu_custom_call.1} parent=1 // pred_check_branch
      %200 = sbr.rel (0) target = $region33
    $region32: #{tpu_custom_call.1} parent=1 // pred_region
      %202 = vsyncadd [#allocation10], 0
      %s204 = sshll.u32 [#allocation13], 4
      %s205 = int_to_ptr.vmem [resolvable:$true] %s204
      %s206 = sshll.u32 %s3, 4
      %s207 = int_to_ptr.hbm [resolvable:$true] %s206
      %209 = dma.vmem_to_hbm [thread:$0]  %s205, 16, %s207, [#allocation10]
    $region33: #{tpu_custom_call.1} parent=1 // pred_fallthru
      _
    // Predicated region
    $region34: #{tpu_custom_call.1} parent=1 // pred_check
      _
    $region35: #{tpu_custom_call.1} parent=1 // pred_check_branch
      %211 = sbr.rel (0) target = $region37
    $region36: #{tpu_custom_call.1} parent=1 // pred_region
      %213 = vsyncadd [#allocation15], 0
      %s215 = sshll.u32 [#allocation14], 4
      %s216 = int_to_ptr.vmem [resolvable:$true] %s215
      %s217 = sshll.u32 %s4, 4
      %s218 = int_to_ptr.hbm [resolvable:$true] %s217
      %220 = dma.vmem_to_hbm [thread:$0]  %s216, 16, %s218, [#allocation15]
    $region37: #{tpu_custom_call.1} parent=1 // pred_fallthru
      _
    // Predicated region
    $region38: #{tpu_custom_call.1} parent=1 // pred_check
      _
    $region39: #{tpu_custom_call.1} parent=1 // pred_check_branch
      %222 = sbr.rel (0) target = $region41
    $region40: #{tpu_custom_call.1} parent=1 // pred_region
      %224 = dma.done [#allocation10], 16
    $region41: #{tpu_custom_call.1} parent=1 // pred_fallthru
      _
    // Predicated region
    $region42: #{tpu_custom_call.1} parent=1 // pred_check
      _
    $region43: #{tpu_custom_call.1} parent=1 // pred_check_branch
      %226 = sbr.rel (0) target = $region45
    $region44: #{tpu_custom_call.1} parent=1 // pred_region
      %228 = dma.done [#allocation15], 16
    $region45: #{tpu_custom_call.1} parent=1 // pred_fallthru
      _
    %229 = vsyncpa [#allocation9], 1
    %230 = vsyncpa [#allocation12], 1
    %231 = vsyncpa [#allocation10], 1
    %232 = vsyncpa [#allocation15], 1

</llo_original>
